<compile_context>
chip_gen: v7x
topology: tpu7x:2x2x1
jax: 0.10.0
libtpu: 0.0.40
codegen_flags: <defaults>
</compile_context>

<pallas_src>
import functools

import jax
import jax.numpy as jnp
from jax.experimental import pallas as pl
from jax.experimental.pallas import tpu as pltpu


def _ce_partial_kernel(n_total, tile_n, logits_ref, targets_ref, out_ref):
    """Writes sum over this row tile of (logsumexp(x) - x[target]) into out_ref."""
    x = logits_ref[...].astype(jnp.float32)             # (tile_n, C), f32 math
    t = targets_ref[...]                                 # (tile_n, 1) int32

    # Numerically-stable log-sum-exp over the class (lane) axis.
    m = jnp.max(x, axis=-1, keepdims=True)               # (tile_n, 1)   lane max
    xs = x - m                                            # one VPU pass, reused below
    p = jnp.exp(xs)                                       # EUP
    s = jnp.sum(p, axis=-1, keepdims=True)                # lane sum

    # Target-class logit via lane-iota one-hot select, reusing the shifted xs.
    col = jax.lax.broadcasted_iota(jnp.int32, x.shape, 1)
    tgt_shift = jnp.sum(jnp.where(col == t, xs, 0.0), axis=-1, keepdims=True)

    # ce = (m + log s) - x[t] = log s - (x[t] - m)
    ce_rows = jnp.log(s) - tgt_shift                      # (tile_n, 1)

    # Mask rows past the true batch size (padded last block). Forward-safe even
    # if padded VMEM rows held garbage (where selects 0).
    row0 = pl.program_id(0) * tile_n
    rows = row0 + jax.lax.broadcasted_iota(jnp.int32, (tile_n, 1), 0)
    ce_rows = jnp.where(rows < n_total, ce_rows, 0.0)

    partial = jnp.sum(ce_rows)                            # scalar partial CE sum
    # Lane-dense full-tile store (unmasked vst); wrapper reads [i, 0, 0].
    out_ref[...] = jnp.full(out_ref.shape, partial, dtype=out_ref.dtype)


def _vmem_plan():
    """Per-generation (vmem_limit_bytes, input_buffer_budget_bytes)."""
    try:
        cap = int(pltpu.get_tpu_info().vmem_capacity_bytes)
    except Exception:
        cap = 64 * 1024 * 1024  # conservative: assume v7x-class VMEM
    if cap >= 100 * 1024 * 1024:          # v5e / v6e: 128 MiB physical
        return 64 * 1024 * 1024, 40 * 1024 * 1024
    else:                                  # v7x-class: 64 MiB physical
        return 48 * 1024 * 1024, 28 * 1024 * 1024


def focal_loss(logits, targets, alpha=1.0, gamma=2.0, tile_n=None):
    """logits: [N, C] float, targets: [N] int class indices -> scalar focal loss.

    Matches torch: ce = CrossEntropyLoss()(logits, targets)  (mean reduction)
                   loss = alpha * (1 - exp(-ce))**gamma * ce
    """
    n, c = logits.shape
    targets2d = targets.astype(jnp.int32).reshape(n, 1)

    itemsize = jnp.dtype(logits.dtype).itemsize
    # Sublane alignment depends on packing: 8 rows (f32), 16 (bf16), 32 (int8/fp8).
    align = 8 * max(1, 4 // itemsize)

    vmem_limit, input_budget = _vmem_plan()

    if tile_n is None:
        # Per-row VMEM cost of one pipeline buffer set:
        #   lane-padded logits row + lane-padded (->128) int32 targets row.
        c_pad = -(-c // 128) * 128
        row_bytes = c_pad * itemsize + 128 * 4
        # Double-buffered inputs must fit the budget.
        tile_n = input_budget // (2 * row_bytes)
        tile_n = max(align, (tile_n // align) * align)

    # Prefer >= 2 row blocks so the "parallel" axis can shard across the two
    # TensorCores on v7x (near-free elsewhere).
    if n >= 2 * align:
        half = -(-(-(-n // 2)) // align) * align          # round_up(ceil(n/2), align)
        tile_n = min(tile_n, half)

    if tile_n >= n:
        tile_n = n                                        # single full-extent block
    else:
        tile_n = max(align, (tile_n // align) * align)    # keep sublane-aligned

    num_blocks = pl.cdiv(n, tile_n)

    kernel = functools.partial(_ce_partial_kernel, n, tile_n)

    cost = pl.CostEstimate(
        flops=5 * n * c,
        transcendentals=n * c + n,
        bytes_accessed=n * c * itemsize + 4 * n + num_blocks * 8 * 128 * 4,
    )

    partials = pl.pallas_call(
        kernel,
        out_shape=jax.ShapeDtypeStruct((num_blocks, 8, 128), jnp.float32),
        grid=(num_blocks,),
        in_specs=[
            pl.BlockSpec((tile_n, c), lambda i: (i, 0)),
            pl.BlockSpec((tile_n, 1), lambda i: (i, 0)),
        ],
        out_specs=pl.BlockSpec((1, 8, 128), lambda i: (i, 0, 0)),
        compiler_params=pltpu.CompilerParams(
            dimension_semantics=("parallel",),
            vmem_limit_bytes=vmem_limit,
        ),
        cost_estimate=cost,
    )(logits, targets2d)

    # Finish the reduction + focal transform on the tiny (num_blocks,) vector in XLA.
    ce = jnp.sum(partials[:, 0, 0]) / jnp.float32(n)
    pt = jnp.exp(-ce)
    return jnp.float32(alpha) * (1.0 - pt) ** jnp.float32(gamma) * ce


def _reference_focal_loss(logits, targets, alpha=1.0, gamma=2.0):
    # Pure-JAX reference replicating F.cross_entropy(reduction='mean') + focal transform.
    logits = logits.astype(jnp.float32)
    lse = jax.scipy.special.logsumexp(logits, axis=-1)
    tgt = jnp.take_along_axis(logits, targets[:, None], axis=-1)[:, 0]
    ce = jnp.mean(lse - tgt)
    pt = jnp.exp(-ce)
    return alpha * (1.0 - pt) ** gamma * ce


if __name__ == "__main__":
    key = jax.random.PRNGKey(0)
    k1, k2 = jax.random.split(key)

    # Small shapes; N not a multiple of the tile so the masked last block is exercised.
    N, C = 50, 128
    logits = jax.random.normal(k1, (N, C), dtype=jnp.float32)
    targets = jax.random.randint(k2, (N,), 0, C, dtype=jnp.int32)

    ref = _reference_focal_loss(logits, targets, alpha=1.0, gamma=2.0)

    # Explicit small-tile path (tile_n=16 -> 4 row blocks, last one padded/masked).
    out_tiled = jax.block_until_ready(
        focal_loss(logits, targets, alpha=1.0, gamma=2.0, tile_n=16))
    assert jnp.allclose(out_tiled, ref, rtol=1e-5, atol=1e-5), (out_tiled, ref)

    # Auto-tile path (budget-sized tile, clamped to >=2 blocks for this N).
    out_auto = jax.block_until_ready(
        focal_loss(logits, targets, alpha=1.0, gamma=2.0))
    assert jnp.allclose(out_auto, ref, rtol=1e-5, atol=1e-5), (out_auto, ref)

    # bf16-logits path (halves HBM bytes; 16-row sublane alignment, f32 math in-kernel).
    logits_bf16 = logits.astype(jnp.bfloat16)
    ref_bf16 = _reference_focal_loss(logits_bf16.astype(jnp.float32), targets)
    out_bf16 = jax.block_until_ready(focal_loss(logits_bf16, targets))
    assert jnp.allclose(out_bf16, ref_bf16, rtol=1e-3, atol=1e-3), (out_bf16, ref_bf16)

    print("KERNEL_OK")
</pallas_src>

<mosaic_0001>
module attributes {stable_mosaic.version = 11 : i64} {
  func.func @_ce_partial_kernel(%arg0: i32, %arg1: memref<16x128xf32, #tpu.memory_space<vmem>>, %arg2: memref<16x1xi32, #tpu.memory_space<vmem>>, %arg3: memref<1x8x128xf32, #tpu.memory_space<vmem>>) attributes {dimension_semantics = [#tpu.dimension_semantics<parallel>], iteration_bounds = array<i64: 4>, scalar_prefetch = 0 : i64, scratch_operands = 0 : i64, tpu.core_type = #tpu.core_type<tc>, window_params = [{transform_indices = @transform_0, window_bounds = array<i64: 16, 128>}, {transform_indices = @transform_1, window_bounds = array<i64: 16, 1>}, {transform_indices = @transform_2, window_bounds = array<i64: 1, 8, 128>}]} {
    %c0 = arith.constant 0 : index
    %c0_0 = arith.constant 0 : index
    %0 = vector.load %arg1[%c0, %c0_0] : memref<16x128xf32, #tpu.memory_space<vmem>>, vector<16x128xf32>
    %c0_1 = arith.constant 0 : index
    %c0_2 = arith.constant 0 : index
    %1 = vector.load %arg2[%c0_1, %c0_2] : memref<16x1xi32, #tpu.memory_space<vmem>>, vector<16x1xi32>
    %cst = arith.constant dense<0xFF800000> : vector<16xf32>
    %2 = vector.multi_reduction <maximumf>, %0, %cst [1] : vector<16x128xf32> to vector<16xf32>
    %3 = vector.shape_cast %2 : vector<16xf32> to vector<16x1xf32>
    %4 = vector.broadcast %3 : vector<16x1xf32> to vector<16x128xf32>
    %5 = arith.subf %0, %4 : vector<16x128xf32>
    %6 = math.exp %5 : vector<16x128xf32>
    %cst_3 = arith.constant dense<0.000000e+00> : vector<16xf32>
    %7 = vector.multi_reduction <add>, %6, %cst_3 [1] : vector<16x128xf32> to vector<16xf32>
    %8 = vector.shape_cast %7 : vector<16xf32> to vector<16x1xf32>
    %9 = tpu.iota {dimensions = array<i32: 1>} : vector<16x128xi32>
    %10 = vector.broadcast %1 : vector<16x1xi32> to vector<16x128xi32>
    %11 = arith.cmpi eq, %9, %10 : vector<16x128xi32>
    %cst_4 = arith.constant 0.000000e+00 : f32
    %12 = vector.broadcast %cst_4 : f32 to vector<16x128xf32>
    %13 = arith.select %11, %5, %12 : vector<16x128xi1>, vector<16x128xf32>
    %cst_5 = arith.constant dense<0.000000e+00> : vector<16xf32>
    %14 = vector.multi_reduction <add>, %13, %cst_5 [1] : vector<16x128xf32> to vector<16xf32>
    %15 = vector.shape_cast %14 : vector<16xf32> to vector<16x1xf32>
    %16 = math.log %8 : vector<16x1xf32>
    %17 = arith.subf %16, %15 : vector<16x1xf32>
    %c16_i32 = arith.constant 16 : i32
    %18 = arith.muli %arg0, %c16_i32 : i32
    %19 = tpu.iota {dimensions = array<i32: 0>} : vector<16x1xi32>
    %20 = vector.broadcast %18 : i32 to vector<16x1xi32>
    %21 = arith.addi %20, %19 : vector<16x1xi32>
    %c50_i32 = arith.constant 50 : i32
    %22 = vector.broadcast %c50_i32 : i32 to vector<16x1xi32>
    %23 = arith.cmpi slt, %21, %22 : vector<16x1xi32>
    %cst_6 = arith.constant 0.000000e+00 : f32
    %24 = vector.broadcast %cst_6 : f32 to vector<16x1xf32>
    %25 = arith.select %23, %17, %24 : vector<16x1xi1>, vector<16x1xf32>
    %26 = vector.shape_cast %25 : vector<16x1xf32> to vector<1x16x1xf32>
    %cst_7 = arith.constant dense<0.000000e+00> : vector<1xf32>
    %27 = vector.multi_reduction <add>, %26, %cst_7 [1, 2] : vector<1x16x1xf32> to vector<1xf32>
    %28 = vector.shape_cast %27 : vector<1xf32> to vector<1x1x1xf32>
    %29 = vector.extract %28[0, 0, 0] : f32 from vector<1x1x1xf32>
    %30 = vector.broadcast %29 : f32 to vector<1x8x128xf32>
    %c0_8 = arith.constant 0 : index
    %c0_9 = arith.constant 0 : index
    %c0_10 = arith.constant 0 : index
    %31 = vector.load %arg3[%c0_8, %c0_9, %c0_10] : memref<1x8x128xf32, #tpu.memory_space<vmem>>, vector<1x8x128xf32>
    tpu.vector_store %arg3[%c0_8, %c0_9, %c0_10], %30 {strides = array<i32>} : memref<1x8x128xf32, #tpu.memory_space<vmem>>, vector<1x8x128xf32>,
    return
  }
  func.func @transform_0(%arg0: i32) -> (i32, i32) {
    %c0_i32 = arith.constant 0 : i32
    %c0_i32_0 = arith.constant 0 : i32
    return %arg0, %c0_i32 : i32, i32
  }
  func.func @transform_1(%arg0: i32) -> (i32, i32) {
    %c0_i32 = arith.constant 0 : i32
    %c0_i32_0 = arith.constant 0 : i32
    return %arg0, %c0_i32 : i32, i32
  }
  func.func @transform_2(%arg0: i32) -> (i32, i32, i32) {
    %c0_i32 = arith.constant 0 : i32
    %c0_i32_0 = arith.constant 0 : i32
    %c0_i32_1 = arith.constant 0 : i32
    return %arg0, %c0_i32, %c0_i32_0 : i32, i32, i32
  }
}

</mosaic_0001>

<llo_original>
// kernel: tpu_custom_call.1
$region0: #{tpu_custom_call.1}
  #allocation0 [shape = 'u32[]', space=smem, size = 0x4, offset = 0x4, fixed_abs, tag = 'smem constant byte address 0x4 - core index']
  #allocation1 [shape = 'u32[144,128]{1,0:T(1,128)}', space=vmem, size = 0x12000, scoped, tag = 'internal scratch']
  %s0 = inlined_call_operand.vmem [shape: f32[50,128], index: 0, kind: input, shape index: {}]
  %s1 = inlined_call_operand.vmem [shape: s32[50,1], index: 1, kind: input, shape index: {}]
  %s2 = inlined_call_operand.hbm [shape: f32[4,8,128], index: 2, kind: output, shape index: {}]
  %s3 = sld [smem:[#allocation0]]
  $region41: #{tpu_custom_call.1} parent=0
    _
  %s5 = ssub.s32 1, %s3
  %s6 = scalar_select 0, %s5, %s3
  $region1: #{tpu_custom_call.1} parent=0
    #allocation2 [shape = 'u8[8192]{0}', space=vmem, size = 0x2000, scoped, tag = 'output window, operand 0']
    #allocation3 [shape = 's32[2]{0}', space=sflag, size = 0x8, scoped, tag = 'scoped memory for tpu_custom_call.1']
    %7 = vsyncpa [#allocation3], 0
    %s8 = scalar_lea.sflag [#allocation3], 1
    %9 = vsyncpa %s8, 0
    loop: start=0, step=1, limit=6
    $region2: #{tpu_custom_call.1} parent=1 // loop_pre_header
      _
    $region3: #{tpu_custom_call.1} parent=1 // loop_header
      %s11 = sphi 0, %s15
      %p12 = scmp.ge.s32.totalorder %s11, 6
      %s21 = sphi 0, %s23
      %s24 = sphi 0, %s21
      %s25 = sphi 0, %s24
      %s41 = sphi 0, %s25
      %s47 = sphi 0, %s49
      %s50 = sphi 0, %s47
      %s51 = sphi 0, %s50
      %s67 = sphi 0, %s51
      %s73 = sphi 0, %s75
      %s76 = sphi 0, %s73
      %s77 = sphi 0, %s76
      %s93 = sphi 0, %s77
    $region4: #{tpu_custom_call.1} parent=1 // loop_header_branch
      %14 = sbr.rel (%p12) target = $region8
    $region5: #{tpu_custom_call.1} parent=1 // loop_body
      %s16 = ssub.s32 %s11, 1
      %s17 = ssub.s32 %s11, 2
      %s18 = sadd.s32 %s11, 1
      %s19 = ssub.s32 %s11, %s18
      %p20 = scmp.eq.s32.totalorder %s19, 0
      %s22 = sadd.s32 %s21, 1
      %s23 = scalar_select %p20, %s21, %s22
      %p26 = pneg %p20
      %p27 = scmp.eq.s32.totalorder %s11, 3
      %p28 = por %p26, %p27
      %p29 = scmp.ne.s32.totalorder %s21, %s24
      %p30 = scmp.eq.s32.totalorder %s11, 0
      %p31 = por %p29, %p30
      %p32 = scmp.ne.s32.totalorder %s21, %s24
      %p33 = scmp.eq.s32.totalorder %s16, 3
      %p34 = por %p32, %p33
      %p35 = scmp.ne.s32.totalorder %s24, %s25
      %p36 = scmp.eq.s32.totalorder %s16, 0
      %p37 = por %p35, %p36
      %p38 = scmp.ne.s32.totalorder %s24, %s25
      %p39 = scmp.eq.s32.totalorder %s17, 3
      %p40 = por %p38, %p39
      %p42 = scmp.ne.s32.totalorder %s25, %s41
      %p43 = scmp.eq.s32.totalorder %s17, 0
      %p44 = por %p42, %p43
      %s45 = ssub.s32 %s11, %s18
      %p46 = scmp.eq.s32.totalorder %s45, 0
      %s48 = sadd.s32 %s47, 1
      %s49 = scalar_select %p46, %s47, %s48
      %p52 = pneg %p46
      %p53 = scmp.eq.s32.totalorder %s11, 3
      %p54 = por %p52, %p53
      %p55 = scmp.ne.s32.totalorder %s47, %s50
      %p56 = scmp.eq.s32.totalorder %s11, 0
      %p57 = por %p55, %p56
      %p58 = scmp.ne.s32.totalorder %s47, %s50
      %p59 = scmp.eq.s32.totalorder %s16, 3
      %p60 = por %p58, %p59
      %p61 = scmp.ne.s32.totalorder %s50, %s51
      %p62 = scmp.eq.s32.totalorder %s16, 0
      %p63 = por %p61, %p62
      %p64 = scmp.ne.s32.totalorder %s50, %s51
      %p65 = scmp.eq.s32.totalorder %s17, 3
      %p66 = por %p64, %p65
      %p68 = scmp.ne.s32.totalorder %s51, %s67
      %p69 = scmp.eq.s32.totalorder %s17, 0
      %p70 = por %p68, %p69
      %s71 = ssub.s32 %s11, %s18
      %p72 = scmp.eq.s32.totalorder %s71, 0
      %s74 = sadd.s32 %s73, 1
      %s75 = scalar_select %p72, %s73, %s74
      %p78 = pneg %p72
      %p79 = scmp.eq.s32.totalorder %s11, 3
      %p80 = por %p78, %p79
      %p81 = scmp.ne.s32.totalorder %s73, %s76
      %p82 = scmp.eq.s32.totalorder %s11, 0
      %p83 = por %p81, %p82
      %p84 = scmp.ne.s32.totalorder %s73, %s76
      %p85 = scmp.eq.s32.totalorder %s16, 3
      %p86 = por %p84, %p85
      %p87 = scmp.ne.s32.totalorder %s76, %s77
      %p88 = scmp.eq.s32.totalorder %s16, 0
      %p89 = por %p87, %p88
      %p90 = scmp.ne.s32.totalorder %s76, %s77
      %p91 = scmp.eq.s32.totalorder %s17, 3
      %p92 = por %p90, %p91
      %p94 = scmp.ne.s32.totalorder %s77, %s93
      %p95 = scmp.eq.s32.totalorder %s17, 0
      %p96 = por %p94, %p95
      %p97 = scmp.le.s32.totalorder 1, %s11
      %p98 = scmp.lt.s32.totalorder %s11, 5
      %p99 = pnand %p97, %p98
      %p100 = pneg %p99
      // Predicated region
      $region9: #{tpu_custom_call.1} parent=5 // pred_check
        _
      $region10: #{tpu_custom_call.1} parent=5 // pred_check_branch
        %102 = sbr.rel (%p99) target = $region12
      $region11: #{tpu_custom_call.1} parent=5 // pred_region
        %s103 = ssub.s32 %s11, 1
      $region12: #{tpu_custom_call.1} parent=5 // pred_fallthru
        _
      %p104 = scmp.lt.s32.totalorder %s11, 4
      // Predicated region
      $region13: #{tpu_custom_call.1} parent=5 // pred_check
        %p105 = pneg %p104
      $region14: #{tpu_custom_call.1} parent=5 // pred_check_branch
        %107 = sbr.rel (%p105) target = $region16
      $region15: #{tpu_custom_call.1} parent=5 // pred_region
        // Predicated region
        $region17: #{tpu_custom_call.1} parent=15 // pred_check
          %p108 = pneg %p31
        $region18: #{tpu_custom_call.1} parent=15 // pred_check_branch
          %110 = sbr.rel (%p108) target = $region20
        $region19: #{tpu_custom_call.1} parent=15 // pred_region
          %s111 = smul.u32 2, %s11
          %s112 = ssub.s32 7, %s111
          %p113 = scmp.lt.s32.totalorder %s112, 2
          %s114 = scalar_select %p113, %s112, 2
          %s115 = smul.u32 128, %s114
          %p116 = scmp.lt.s32.totalorder %s111, 6
          %s117 = scalar_select %p116, %s111, 6
          %s118 = smul.addr %s117, 8
          %s119 = scalar_lea.vmem %s0, %s118
          %s120 = smul.u32 2, %s11
          %s121 = ssub.s32 7, %s120
          %p122 = scmp.lt.s32.totalorder %s121, 2
          %s123 = scalar_select %p122, %s121, 2
          %s124 = smul.u32 128, %s123
        $region20: #{tpu_custom_call.1} parent=15 // pred_fallthru
          _
        // Predicated region
        $region21: #{tpu_custom_call.1} parent=15 // pred_check
          %p125 = pneg %p57
        $region22: #{tpu_custom_call.1} parent=15 // pred_check_branch
          %127 = sbr.rel (%p125) target = $region24
        $region23: #{tpu_custom_call.1} parent=15 // pred_region
          %s128 = smul.u32 2, %s11
          %s129 = ssub.s32 7, %s128
          %p130 = scmp.lt.s32.totalorder %s129, 2
          %s131 = scalar_select %p130, %s129, 2
          %s132 = smul.u32 128, %s131
          %p133 = scmp.lt.s32.totalorder %s128, 6
          %s134 = scalar_select %p133, %s128, 6
          %s135 = smul.addr %s134, 8
          %s136 = scalar_lea.vmem %s1, %s135
          %s137 = smul.u32 2, %s11
          %s138 = ssub.s32 7, %s137
          %p139 = scmp.lt.s32.totalorder %s138, 2
          %s140 = scalar_select %p139, %s138, 2
          %s141 = smul.u32 128, %s140
        $region24: #{tpu_custom_call.1} parent=15 // pred_fallthru
          _
      $region16: #{tpu_custom_call.1} parent=5 // pred_fallthru
        _
      %p142 = scmp.le.s32.totalorder 1, %s11
      %p143 = scmp.lt.s32.totalorder %s11, 5
      %p144 = pnand %p142, %p143
      %p145 = pneg %p144
      // Predicated region
      $region25: #{tpu_custom_call.1} parent=5 // pred_check
        _
      $region26: #{tpu_custom_call.1} parent=5 // pred_check_branch
        %147 = sbr.rel (%p144) target = $region28
      $region27: #{tpu_custom_call.1} parent=5 // pred_region
        %s148 = ssub.s32 %s11, 1
        %s149 = smul.u32 2, %s16
        %s150 = ssub.s32 7, %s149
        %p151 = scmp.lt.s32.totalorder %s150, 2
        %s152 = scalar_select %p151, %s150, 2
        %s153 = smul.u32 128, %s152
        %p154 = scmp.lt.s32.totalorder %s149, 6
        %s155 = scalar_select %p154, %s149, 6
        %s156 = smul.addr %s155, 8
        %s157 = scalar_lea.vmem %s0, %s156
        %p158 = pneg %p37
        %p159 = pneg %p34
        %s160 = smul.u32 2, %s16
        %s161 = ssub.s32 7, %s160
        %p162 = scmp.lt.s32.totalorder %s161, 2
        %s163 = scalar_select %p162, %s161, 2
        %s164 = smul.u32 128, %s163
        %p165 = scmp.lt.s32.totalorder %s160, 6
        %s166 = scalar_select %p165, %s160, 6
        %s167 = smul.addr %s166, 8
        %s168 = scalar_lea.vmem %s1, %s167
        %p169 = pneg %p63
        %p170 = pneg %p60
        %p171 = pneg %p89
        %p172 = pneg %p86
        %s173 = sand.u32 %s76, 1
        %s174 = scalar_lea.sflag [#allocation3], %s173
        %s175 = sand.u32 %s76, 1
        %s176 = smul.addr %s175, 8
        %s177 = scalar_lea.vmem [#allocation2], %s176
        %s178 = smul.u32 2, %s16
        %s179 = ssub.s32 7, %s178
        %p180 = scmp.lt.s32.totalorder %s179, 2
        %s181 = scalar_select %p180, %s179, 2
        %s182 = smul.u32 128, %s181
        %p183 = scmp.lt.s32.totalorder %s178, 6
        %s184 = scalar_select %p183, %s178, 6
        %s185 = smul.addr %s184, 8
        %s186 = scalar_lea.vmem %s0, %s185
        %s187 = smul.u32 2, %s16
        %s188 = ssub.s32 7, %s187
        %p189 = scmp.lt.s32.totalorder %s188, 2
        %s190 = scalar_select %p189, %s188, 2
        %s191 = smul.u32 128, %s190
        %s192 = smul.u32 2, %s16
        %s193 = ssub.s32 7, %s192
        %p194 = scmp.lt.s32.totalorder %s193, 2
        %s195 = scalar_select %p194, %s193, 2
        %s196 = smul.u32 128, %s195
        %p197 = scmp.lt.s32.totalorder %s192, 6
        %s198 = scalar_select %p197, %s192, 6
        %s199 = smul.addr %s198, 8
        %s200 = scalar_lea.vmem %s1, %s199
        %s201 = smul.u32 2, %s16
        %s202 = ssub.s32 7, %s201
        %p203 = scmp.lt.s32.totalorder %s202, 2
        %s204 = scalar_select %p203, %s202, 2
        %s205 = smul.u32 128, %s204
        %v206 = vld [vmem:[%s186] sm:$0xff]
        %v207 = vld [vmem:[%s186 + $0x8] sm:$0xff]
        %v208 = vld [vmem:[%s200] sm:$0xff]
        %v209 = vld [vmem:[%s200 + $0x8] sm:$0xff]
        %210 = vmax.xlane.f32.xlu0 %v206
        %v211 = vpop.xlane.xlu0 %210
        %212 = vmax.xlane.f32.xlu0 %v207
        %v213 = vpop.xlane.xlu0 %212
        %v214 = vsub.f32 %v206, %v211
        %v215 = vsub.f32 %v207, %v213
        %v216 = vmul.f32 %v214, 1.442695
        %v217 = vpow.pop %v216
        %v218 = vmul.f32 %v215, 1.442695
        %v219 = vpow.pop %v218
        %220 = vadd.xlane.f32.xlu0 %v217
        %v221 = vpop.xlane.xlu0 %220
        %222 = vadd.xlane.f32.xlu0 %v219
        %v223 = vpop.xlane.xlu0 %222
        %v224 = vlaneseq
        %v225 = vand.u32 %v224, 127
        %226 = vset.pattern.permute.xlu0 0
        %227 = vperm.xlu0 %226, %v208
        %v228 = vpop.permute.xlu0 %227
        %229 = vset.pattern.permute.xlu0 0
        %230 = vperm.xlu0 %229, %v209
        %v231 = vpop.permute.xlu0 %230
        %vm232 = vcmp.eq.s32.totalorder %v225, %v228
        %vm233 = vcmp.eq.s32.totalorder %v225, %v231
        %v234 = vsel %vm232, %v214, 0.0
        %v235 = vsel %vm233, %v215, 0.0
        %236 = vadd.xlane.f32.xlu0 %v234
        %v237 = vpop.xlane.xlu0 %236
        %238 = vadd.xlane.f32.xlu0 %v235
        %v239 = vpop.xlane.xlu0 %238
        %v240 = vlog2.pop %v221
        %v241 = vmul.f32 %v240, 0.6931472
        %v242 = vlog2.pop %v223
        %v243 = vmul.f32 %v242, 0.6931472
        %v244 = vsub.f32 %v241, %v237
        %v245 = vsub.f32 %v243, %v239
        %s246 = smul.u32 %s16, 16
        %v247 = vlaneseq
        %v248 = vshrl.u32 %v247, 7
        %v249 = vadd.s32 %v248, 8
        %v250 = vstv %s246
        %v251 = vadd.s32 %v250, %v248
        %v252 = vadd.s32 %v250, %v249
        %vm253 = vcmp.lt.s32.totalorder %v251, 50
        %vm254 = vcmp.lt.s32.totalorder %v252, 50
        %v255 = vsel %vm253, %v244, 0.0
        %v256 = vsel %vm254, %v245, 0.0
        %vm257 = vcmask 7168
        %v258 = vsel %vm257, %v255, 0.0
        %v259 = vsel %vm257, %v256, 0.0
        %v260 = vadd.f32 %v258, %v259
        %261 = vadd.xlane.f32.xlu0 %v260
        %v262 = vpop.xlane.xlu0 %261
        %v263 = vrot.slane %v262, 4
        %v264 = vadd.f32 %v262, %v263
        %v265 = vrot.slane %v264, 2
        %v266 = vadd.f32 %v264, %v265
        %v267 = vrot.slane %v266, 1
        %v268 = vadd.f32 %v266, %v267
        %s269 = vtos %v268
        %v270 = vstv %s269
        %271 = vst [vmem:[%s177] sm:$0xff] %v270
        %s272 = sand.u32 %s76, 1
        %s273 = scalar_lea.sflag [#allocation3], %s272
        %s274 = sand.u32 %s76, 1
        %s275 = smul.addr %s274, 8
        %s276 = scalar_lea.vmem [#allocation2], %s275
        // Predicated region
        $region29: #{tpu_custom_call.1} parent=27 // pred_check
          %p277 = pneg %p86
        $region30: #{tpu_custom_call.1} parent=27 // pred_check_branch
          %279 = sbr.rel (%p277) target = $region32
        $region31: #{tpu_custom_call.1} parent=27 // pred_region
          %s281 = ssub.s32 128, 128
          %282 = vsyncadd %s273, %s281
          %s283 = smul.addr %s16, 128
          %s284 = scalar_lea.hbm %s2, %s283
          %s286 = sshll.u32 %s276, 4
          %s287 = int_to_ptr.vmem [resolvable:$true] %s286
          %289 = dma.vmem_to_hbm [thread:$0]  %s287, 128, %s284, %s273
        $region32: #{tpu_custom_call.1} parent=27 // pred_fallthru
          _
      $region28: #{tpu_custom_call.1} parent=5 // pred_fallthru
        _
      %p290 = scmp.le.s32.totalorder 2, %s11
      // Predicated region
      $region33: #{tpu_custom_call.1} parent=5 // pred_check
        %p291 = pneg %p290
      $region34: #{tpu_custom_call.1} parent=5 // pred_check_branch
        %293 = sbr.rel (%p291) target = $region36
      $region35: #{tpu_custom_call.1} parent=5 // pred_region
        %s294 = ssub.s32 %s11, 2
        // Predicated region
        $region37: #{tpu_custom_call.1} parent=35 // pred_check
          %p295 = pneg %p92
        $region38: #{tpu_custom_call.1} parent=35 // pred_check_branch
          %297 = sbr.rel (%p295) target = $region40
        $region39: #{tpu_custom_call.1} parent=35 // pred_region
          %s298 = sand.u32 %s77, 1
          %s299 = scalar_lea.sflag [#allocation3], %s298
          %s300 = sand.u32 %s77, 1
          %s301 = smul.addr %s300, 8
          %s302 = scalar_lea.vmem [#allocation2], %s301
          %303 = dma.done %s299, 128
        $region40: #{tpu_custom_call.1} parent=35 // pred_fallthru
          _
      $region36: #{tpu_custom_call.1} parent=5 // pred_fallthru
        _
    $region6: #{tpu_custom_call.1} parent=1 // loop_footer
      %s15 = sadd.s32 1, %s11
    $region7: #{tpu_custom_call.1} parent=1 // loop_footer_branch
      %10 = sbr.rel target = $region3
    $region8: #{tpu_custom_call.1} parent=1 // loop_exit
      _
    %304 = vsyncpa [#allocation3], 1
    %s305 = scalar_lea.sflag [#allocation3], 1
    %306 = vsyncpa %s305, 1

</llo_original>
